<compile_context>
chip_gen: v6e
topology: v6e:2x2x1
jax: 0.10.0
libtpu: 0.0.40
codegen_flags: <defaults>
</compile_context>

<pallas_src>
import functools
import numpy as np

import jax
import jax.numpy as jnp
from jax import lax
from jax.experimental import pallas as pl
from jax.experimental.pallas import tpu as pltpu


# ----------------------------------------------------------------------------
# Small helpers
# ----------------------------------------------------------------------------
def _round_up(x, m):
    return (x + m - 1) // m * m


def _pick_tile(dim, candidates):
    for t in candidates:
        if dim % t == 0:
            return t
    return dim


def _divisor_tile(n, cap):
    """Largest multiple-of-8 divisor of n that is <= cap (or None)."""
    hi = min(cap, n)
    hi -= hi % 8
    for t in range(hi, 7, -8):
        if n % t == 0:
            return t
    return None


def _lane_tile(C, max_tile=512):
    for t in (max_tile, 256, 128):
        if t <= max_tile and C % t == 0:
            return t
    return C  # full channel dim (allowed when it equals the array dim)


def _row_tile(R, cap=512):
    """Pick a sublane tile for a length-R axis; returns (tile, padded_R)."""
    if R <= cap:
        return R, R
    t = _divisor_tile(R, cap)
    if t is not None:
        return t, R
    t = min(cap, 256)
    return t, _round_up(R, t)


def _pick_tm(M, cap=512):
    """Row tile for GEMMs: prefer an exact divisor of M (no pad/slice pass)."""
    t = _divisor_tile(M, cap)
    if t is not None:
        return t, M
    if M <= cap:
        Mp = _round_up(M, 8)
        return Mp, Mp
    return 256, _round_up(M, 256)


# ----------------------------------------------------------------------------
# Pallas kernel: tiled bf16 matmul, f32 acc + bias (+ residual) (+ ReLU)
# ----------------------------------------------------------------------------
def _matmul_bias_kernel(*refs, apply_relu, has_residual):
    if has_residual:
        a_ref, b_ref, bias_ref, res_ref, o_ref, acc_ref = refs
    else:
        a_ref, b_ref, bias_ref, o_ref, acc_ref = refs
        res_ref = None

    @pl.when(pl.program_id(2) == 0)
    def _():
        acc_ref[...] = jnp.zeros_like(acc_ref)

    acc_ref[...] += jnp.dot(a_ref[...], b_ref[...],
                            preferred_element_type=jnp.float32)

    @pl.when(pl.program_id(2) == pl.num_programs(2) - 1)
    def _():
        r = acc_ref[...] + bias_ref[...]          # f32 epilogue
        if has_residual:
            r = r + res_ref[...].astype(jnp.float32)
        if apply_relu:
            r = jnp.maximum(r, 0.0)
        o_ref[...] = r.astype(o_ref.dtype)


def pallas_matmul_bias(a, gemm, apply_relu=False, residual=None,
                       out_dtype=jnp.bfloat16, trim_n=True):
    """(M,K) activations @ pre-padded (Kp,Np) bf16 weights + (1,Np) f32 bias.

    Optionally fuses a residual add (same shape as the output) and a ReLU into
    the last-k epilogue.
    """
    w_p, bias_p, n_out = gemm['w'], gemm['b'], gemm['n_out']
    M, K = a.shape
    Kp, Np = w_p.shape
    assert Kp >= K and Np >= n_out

    tm, Mp = _pick_tm(M, cap=512)
    tk = _pick_tile(Kp, (512, 256, 128)) if Kp % 128 == 0 else Kp
    tn = _pick_tile(Np, (1024, 512, 256, 128)) if Np % 128 == 0 else Np
    # Keep >= 2 tiles on a parallel axis for dual-TensorCore chips; split M
    # (not N) so the output store stays lane-dense (unmasked vst).
    if Mp // tm == 1 and Np // tn == 1 and tm >= 16 and tm % 16 == 0:
        tm //= 2

    a_p = a.astype(jnp.bfloat16)
    if (Mp, Kp) != (M, K):
        a_p = jnp.pad(a_p, ((0, Mp - M), (0, Kp - K)))

    inputs = [a_p, w_p, bias_p]
    in_specs = [
        pl.BlockSpec((tm, tk), lambda i, j, k: (i, k)),
        pl.BlockSpec((tk, tn), lambda i, j, k: (k, j)),
        pl.BlockSpec((1, tn), lambda i, j, k: (0, j)),
    ]
    has_residual = residual is not None
    if has_residual:
        assert Np == n_out and residual.shape == (M, n_out)
        res = residual
        if Mp != M:
            res = jnp.pad(res, ((0, Mp - M), (0, 0)))
        inputs.append(res)
        in_specs.append(pl.BlockSpec((tm, tn), lambda i, j, k: (i, j)))

    flops = 2 * Mp * Np * Kp
    bytes_accessed = ((Mp * Kp + Kp * Np) * 2
                      + Mp * Np * jnp.dtype(out_dtype).itemsize)
    if has_residual:
        bytes_accessed += Mp * Np * 2

    kernel = functools.partial(_matmul_bias_kernel, apply_relu=apply_relu,
                               has_residual=has_residual)
    out = pl.pallas_call(
        kernel,
        out_shape=jax.ShapeDtypeStruct((Mp, Np), out_dtype),
        grid_spec=pltpu.PrefetchScalarGridSpec(
            num_scalar_prefetch=0,
            grid=(Mp // tm, Np // tn, Kp // tk),
            in_specs=in_specs,
            out_specs=pl.BlockSpec((tm, tn), lambda i, j, k: (i, j)),
            scratch_shapes=[pltpu.VMEM((tm, tn), jnp.float32)],
        ),
        compiler_params=pltpu.CompilerParams(
            dimension_semantics=("parallel", "parallel", "arbitrary"),
            vmem_limit_bytes=32 * 1024 * 1024),
        cost_estimate=pl.CostEstimate(flops=int(flops), transcendentals=0,
                                      bytes_accessed=int(bytes_accessed)),
    )(*inputs)

    n_keep = n_out if trim_n else Np
    if Mp != M or n_keep != Np:
        out = out[:M, :n_keep]
    return out


# ----------------------------------------------------------------------------
# Pallas kernel: implicit-GEMM 3x3 stride-1 pad-1 (grouped) convolution
# ----------------------------------------------------------------------------
def _conv3x3_kernel(x_ref, w_ref, b_ref, o_ref, *, H, W, apply_relu):
    cg = x_ref.shape[-1]
    tn = o_ref.shape[-1]
    x = x_ref[...].reshape(H + 2, W + 2, cg)        # padded input slab
    w = w_ref[...].reshape(9, cg, tn)               # per-tap weights
    acc = jnp.zeros((H * W, tn), jnp.float32)
    for di in range(3):
        for dj in range(3):
            win = x[di:di + H, dj:dj + W, :].reshape(H * W, cg)
            acc = acc + jnp.dot(win, w[di * 3 + dj],
                                preferred_element_type=jnp.float32)
    r = acc + b_ref[...].reshape(1, tn)
    if apply_relu:
        r = jnp.maximum(r, 0.0)
    o_ref[...] = r.reshape(1, 1, H, W, tn).astype(o_ref.dtype)


def conv3x3_same(x, layer, relu=True):
    """3x3 / stride-1 / pad-1 (grouped) conv as implicit GEMM.

    x: (N, H, W, C) bf16.  Returns (G, N, H, W, Coutp) bf16 (per-group split
    kept so SplAt does not need a channel-concat round trip).
    """
    N, H, W, _ = x.shape
    G, cg = layer['groups'], layer['cin_g']
    coutp, tn = layer['coutp'], layer['tn']

    xp = jnp.pad(x, ((0, 0), (1, 1), (1, 1), (0, 0)))
    if G == 1:
        xs = xp[:, :, :, :cg][None]
    else:
        xs = jnp.stack([xp[..., g * cg:(g + 1) * cg] for g in range(G)], axis=0)

    flops = 2 * G * N * H * W * 9 * cg * coutp
    bytes_accessed = (xs.size + layer['w9'].size) * 2 + G * N * H * W * coutp * 2

    kernel = functools.partial(_conv3x3_kernel, H=H, W=W, apply_relu=relu)
    out = pl.pallas_call(
        kernel,
        out_shape=jax.ShapeDtypeStruct((G, N, H, W, coutp), jnp.bfloat16),
        grid_spec=pltpu.PrefetchScalarGridSpec(
            num_scalar_prefetch=0,
            grid=(G, N, coutp // tn),
            in_specs=[
                pl.BlockSpec((1, 1, H + 2, W + 2, cg),
                             lambda g, n, j: (g, n, 0, 0, 0)),
                pl.BlockSpec((1, 9, cg, tn), lambda g, n, j: (g, 0, 0, j)),
                pl.BlockSpec((1, 1, tn), lambda g, n, j: (g, 0, j)),
            ],
            out_specs=pl.BlockSpec((1, 1, H, W, tn),
                                   lambda g, n, j: (g, n, 0, 0, j)),
        ),
        compiler_params=pltpu.CompilerParams(
            dimension_semantics=("parallel", "parallel", "parallel"),
            vmem_limit_bytes=32 * 1024 * 1024),
        cost_estimate=pl.CostEstimate(flops=int(flops), transcendentals=0,
                                      bytes_accessed=int(bytes_accessed)),
    )(xs, layer['w9'], layer['b'])
    return out


# ----------------------------------------------------------------------------
# Pallas kernel: tiled global average pool (of a sum of inputs)
# ----------------------------------------------------------------------------
def _gap_kernel(*refs, inv_hw):
    *in_refs, o_ref, acc_ref = refs

    @pl.when(pl.program_id(1) == 0)
    def _():
        acc_ref[...] = jnp.zeros_like(acc_ref)

    s = in_refs[0][...].astype(jnp.float32)
    for r in in_refs[1:]:
        s = s + r[...].astype(jnp.float32)
    acc_ref[...] += jnp.sum(s, axis=1)

    @pl.when(pl.program_id(1) == pl.num_programs(1) - 1)
    def _():
        o_ref[...] = acc_ref[...] * inv_hw


def global_avg_pool_sum(xs):
    """mean over spatial of sum(xs); each x: (N, HW, C) -> (N, C) float32."""
    N, HW, C = xs[0].shape
    t_c = _lane_tile(C)
    t_hw, HWp = _row_tile(HW, 512)
    if HWp != HW:
        xs = [jnp.pad(x, ((0, 0), (0, HWp - HW), (0, 0))) for x in xs]
    kernel = functools.partial(_gap_kernel, inv_hw=1.0 / float(HW))
    return pl.pallas_call(
        kernel,
        out_shape=jax.ShapeDtypeStruct((N, C), jnp.float32),
        grid_spec=pltpu.PrefetchScalarGridSpec(
            num_scalar_prefetch=0,
            grid=(C // t_c, HWp // t_hw),
            in_specs=[pl.BlockSpec((N, t_hw, t_c), lambda j, k: (0, k, j))
                      for _ in xs],
            out_specs=pl.BlockSpec((N, t_c), lambda j, k: (0, j)),
            scratch_shapes=[pltpu.VMEM((N, t_c), jnp.float32)],
        ),
        compiler_params=pltpu.CompilerParams(
            dimension_semantics=("parallel", "arbitrary")),
    )(*xs)


# ----------------------------------------------------------------------------
# Pallas kernels: fused SplAt attention (fc1+ReLU+fc2+rSoftMax) and combine
# ----------------------------------------------------------------------------
def _splat_attn_kernel(u_ref, w1_ref, b1_ref, w2a_ref, b2a_ref,
                       w2b_ref, b2b_ref, a0_ref, a1_ref):
    u = u_ref[...].astype(jnp.bfloat16)
    g = jnp.dot(u, w1_ref[...], preferred_element_type=jnp.float32) + b1_ref[...]
    g = jnp.maximum(g, 0.0).astype(jnp.bfloat16)
    # fc2 split into two matrices so the radix-0/radix-1 logits come from
    # separate matmuls (no mid-vreg column slice at a non-128 boundary).
    l0 = jnp.dot(g, w2a_ref[...], preferred_element_type=jnp.float32) + b2a_ref[...]
    l1 = jnp.dot(g, w2b_ref[...], preferred_element_type=jnp.float32) + b2b_ref[...]
    m = jnp.maximum(l0, l1)
    e0 = jnp.exp(l0 - m)
    e1 = jnp.exp(l1 - m)
    inv = pl.reciprocal(e0 + e1, approx=True)
    a0_ref[...] = e0 * inv
    a1_ref[...] = e1 * inv


def splat_attention(u, sp):
    """u: (Nb, c) f32 -> radix-softmax attentions a0, a1 each (Nb, 1, c) f32."""
    Nb, c = u.shape
    Nbp = _round_up(Nb, 8)
    u_p = u if Nbp == Nb else jnp.pad(u, ((0, Nbp - Nb), (0, 0)))
    a0, a1 = pl.pallas_call(
        _splat_attn_kernel,
        out_shape=(jax.ShapeDtypeStruct((Nbp, c), jnp.float32),
                   jax.ShapeDtypeStruct((Nbp, c), jnp.float32)),
    )(u_p, sp['fc1_w'], sp['fc1_b'], sp['fc2a_w'], sp['fc2a_b'],
      sp['fc2b_w'], sp['fc2b_b'])
    return a0[:Nb].reshape(Nb, 1, c), a1[:Nb].reshape(Nb, 1, c)


def _splat_combine_kernel(s0_ref, s1_ref, a0_ref, a1_ref, o_ref):
    r = (a0_ref[...] * s0_ref[...].astype(jnp.float32)
         + a1_ref[...] * s1_ref[...].astype(jnp.float32))
    o_ref[...] = r.astype(o_ref.dtype)


def splat_combine(s0, s1, a0, a1):
    """s0,s1: (N,HW,c) bf16; a0,a1: (N,1,c) f32 -> (N,HW,c) bf16."""
    N, HW, c = s0.shape
    t_hw, HWp = _row_tile(HW, 512)
    if HWp != HW:
        s0 = jnp.pad(s0, ((0, 0), (0, HWp - HW), (0, 0)))
        s1 = jnp.pad(s1, ((0, 0), (0, HWp - HW), (0, 0)))
    out = pl.pallas_call(
        _splat_combine_kernel,
        out_shape=jax.ShapeDtypeStruct((N, HWp, c), s0.dtype),
        grid_spec=pltpu.PrefetchScalarGridSpec(
            num_scalar_prefetch=0,
            grid=(N, HWp // t_hw),
            in_specs=[pl.BlockSpec((1, t_hw, c), lambda n, h: (n, h, 0)),
                      pl.BlockSpec((1, t_hw, c), lambda n, h: (n, h, 0)),
                      pl.BlockSpec((1, 1, c), lambda n, h: (n, 0, 0)),
                      pl.BlockSpec((1, 1, c), lambda n, h: (n, 0, 0))],
            out_specs=pl.BlockSpec((1, t_hw, c), lambda n, h: (n, h, 0)),
        ),
        compiler_params=pltpu.CompilerParams(
            dimension_semantics=("parallel", "parallel")),
    )(s0, s1, a0, a1)
    return out[:, :HW, :]


# ----------------------------------------------------------------------------
# Convolution / pooling glue
# ----------------------------------------------------------------------------
def _im2col(x, kh, kw, stride, pad):
    """x: (N,H,W,C) -> (N*Ho*Wo, kh*kw*C), patch order (kh, kw, C).

    Only used for the stem conv1 (3x3 stride-2, Cin=3) where K = 27 is tiny.
    """
    N, H, W, C = x.shape
    xp = jnp.pad(x, ((0, 0), (pad, pad), (pad, pad), (0, 0)))
    Ho = (H + 2 * pad - kh) // stride + 1
    Wo = (W + 2 * pad - kw) // stride + 1
    cols = []
    for i in range(kh):
        for j in range(kw):
            cols.append(xp[:, i:i + (Ho - 1) * stride + 1:stride,
                           j:j + (Wo - 1) * stride + 1:stride, :])
    col = cols[0] if len(cols) == 1 else jnp.concatenate(cols, axis=-1)
    return col.reshape(N * Ho * Wo, kh * kw * C), Ho, Wo


def conv1x1(x, gemm, relu=False, residual=None, trim_n=True,
            out_dtype=jnp.bfloat16):
    """1x1 conv (+folded BN bias, optional fused residual+ReLU) as a GEMM."""
    N, H, W, C = x.shape
    a = x.reshape(N * H * W, C)
    res = None
    if residual is not None:
        res = residual.reshape(N * H * W, residual.shape[-1])
    o = pallas_matmul_bias(a, gemm, apply_relu=relu, residual=res,
                           out_dtype=out_dtype, trim_n=trim_n)
    return o.reshape(N, H, W, -1)


def max_pool_3x3_s2(x):
    return lax.reduce_window(x, jnp.array(-jnp.inf, dtype=x.dtype), lax.max,
                             (1, 3, 3, 1), (1, 2, 2, 1),
                             [(0, 0), (1, 1), (1, 1), (0, 0)])


def avg_pool(x, k, s, pad):
    # count_include_pad=True divisor (PyTorch AvgPool2d default); the avg_down
    # pool (k=s, pad=0) divides evenly so ceil_mode/count_include_pad are moot.
    # Sum done in bf16 (9 taps) to avoid an f32 activation copy in HBM.
    summed = lax.reduce_window(x, jnp.array(0, x.dtype), lax.add,
                               (1, k, k, 1), (1, s, s, 1),
                               [(0, 0), (pad, pad), (pad, pad), (0, 0)])
    return (summed * (1.0 / float(k * k))).astype(x.dtype)


# ----------------------------------------------------------------------------
# Parameter construction (synthetic weights, BN folded, GEMM-prepacked bf16)
# ----------------------------------------------------------------------------
class ParamGen:
    def __init__(self, seed=0):
        self._key = jax.random.PRNGKey(seed)

    def _next(self):
        self._key, k = jax.random.split(self._key)
        return k

    def normal(self, shape, scale):
        return scale * jax.random.normal(self._next(), shape, jnp.float32)


def _folded_convbn(pg, kh, kw, cin, cout, groups=1, conv_bias=False):
    """Draw conv (+optional bias) and eval-mode BN, fold BN into (w, b)."""
    cin_g = cin // groups
    fan_in = kh * kw * cin_g
    w = pg.normal((kh, kw, cin_g, cout), 1.0 / np.sqrt(fan_in))
    b0 = pg.normal((cout,), 0.01) if conv_bias else jnp.zeros((cout,), jnp.float32)
    gamma = 1.0 + pg.normal((cout,), 0.05)
    beta = pg.normal((cout,), 0.05)
    mean = pg.normal((cout,), 0.05)
    var = 1.0 + 0.1 * jnp.abs(pg.normal((cout,), 1.0))
    scale = gamma / jnp.sqrt(var + 1e-5)
    return w * scale, (b0 - mean) * scale + beta


def _prepack_gemm(wm, b):
    """(K, cout) weights + bias -> padded bf16 GEMM matrix / f32 bias row."""
    K, cout = wm.shape
    Kp = _round_up(K, 8) if K < 128 else _round_up(K, 128)
    Np = cout if cout < 128 else _round_up(cout, 128)
    wp = jnp.zeros((Kp, Np), jnp.bfloat16).at[:K, :cout].set(
        wm.astype(jnp.bfloat16))
    bp = jnp.zeros((1, Np), jnp.float32).at[0, :cout].set(b)
    return {'w': wp, 'b': bp, 'n_out': cout}


def _prepack_conv3x3(w, b, groups):
    """(3,3,cin_g,cout) + bias -> stacked per-group per-tap bf16 weights."""
    kh, kw, cin_g, cout = w.shape
    cout_g = cout // groups
    coutp = cout_g if cout_g < 128 else _round_up(cout_g, 128)
    w9 = jnp.zeros((groups, kh * kw, cin_g, coutp), jnp.bfloat16)
    bb = jnp.zeros((groups, 1, coutp), jnp.float32)
    for g in range(groups):
        wg = w[:, :, :, g * cout_g:(g + 1) * cout_g].reshape(
            kh * kw, cin_g, cout_g)
        w9 = w9.at[g, :, :, :cout_g].set(wg.astype(jnp.bfloat16))
        bb = bb.at[g, 0, :cout_g].set(b[g * cout_g:(g + 1) * cout_g])
    tn = coutp if coutp % 128 != 0 else _pick_tile(coutp, (512, 256, 128))
    return {'w9': w9, 'b': bb, 'groups': groups, 'cin_g': cin_g,
            'coutp': coutp, 'cout_g': cout_g, 'tn': tn}


def make_conv3x3(pg, cin, cout, groups=1):
    w, b = _folded_convbn(pg, 3, 3, cin, cout, groups)
    return _prepack_conv3x3(w, b, groups)


def make_conv1x1(pg, cin, cout):
    w, b = _folded_convbn(pg, 1, 1, cin, cout, 1)
    return _prepack_gemm(w.reshape(cin, cout), b)


def make_stem_conv1(pg, cout):
    w, b = _folded_convbn(pg, 3, 3, 3, cout)
    return _prepack_gemm(w.reshape(27, cout), b)


def make_splat(pg, in_ch, channels, radix=2, groups=1, reduction_factor=4):
    inter = max(in_ch * radix // reduction_factor, 32)
    conv = make_conv3x3(pg, in_ch, channels * radix, groups=groups * radix)
    # fc1 (1x1 conv with bias) + bn1 folded
    w1, b1 = _folded_convbn(pg, 1, 1, channels, inter, groups=1, conv_bias=True)
    # fc2 (1x1 conv with bias), no BN; split column-wise by radix.
    w2 = pg.normal((inter, channels * radix), 1.0 / np.sqrt(inter))
    b2 = pg.normal((channels * radix,), 0.01)
    return {
        'conv': conv,
        'fc1_w': w1.reshape(channels, inter).astype(jnp.bfloat16),
        'fc1_b': b1.reshape(1, inter),
        'fc2a_w': w2[:, :channels].astype(jnp.bfloat16),
        'fc2a_b': b2[:channels].reshape(1, channels),
        'fc2b_w': w2[:, channels:].astype(jnp.bfloat16),
        'fc2b_b': b2[channels:].reshape(1, channels),
        'channels': channels, 'radix': radix,
    }


def make_bottleneck(pg, inplanes, planes, stride, avd, with_downsample):
    gw = planes  # cardinality=1, bottleneck_width=64 -> group_width == planes
    blk = {
        'conv1': make_conv1x1(pg, inplanes, gw),
        'splat': make_splat(pg, gw, gw),
        'conv3': make_conv1x1(pg, gw, planes * 4),
        'stride': stride,
        'avd': avd,
        'downsample': None,
    }
    if with_downsample:
        blk['downsample'] = {
            'pool_stride': stride,  # avg_down AvgPool(k=stride, s=stride)
            'conv': make_conv1x1(pg, inplanes, planes * 4),
        }
    return blk


def build_imgencoder_params(feature_size, seed=0):
    pg = ParamGen(seed)
    stem_width = 32
    params = {'stem': [
        make_stem_conv1(pg, stem_width),                    # conv s2 + bn + relu
        make_conv3x3(pg, stem_width, stem_width),           # conv    + bn + relu
        make_conv3x3(pg, stem_width, stem_width * 2),       # conv + model.bn1 + relu
    ]}
    inplanes = stem_width * 2
    layers = []
    for planes, nblocks, stride in [(64, 3, 1), (128, 4, 2), (256, 6, 2), (512, 3, 2)]:
        blocks = []
        avd = stride > 1  # resnest50: avd=True and (stride>1 or is_first); layer1 is_first=False
        blocks.append(make_bottleneck(pg, inplanes, planes, stride, avd, True))
        inplanes = planes * 4
        for _ in range(nblocks - 1):
            blocks.append(make_bottleneck(pg, inplanes, planes, 1, False, False))
        layers.append(blocks)
    params['layers'] = layers
    params['fc'] = _prepack_gemm(
        pg.normal((inplanes, feature_size), 1.0 / np.sqrt(inplanes)),
        pg.normal((feature_size,), 0.01))                    # 2048 -> feature_size
    return params


# ----------------------------------------------------------------------------
# Forward pass
# ----------------------------------------------------------------------------
def splat_forward(x, sp):
    """SplAtConv2d (radix=2, cardinality=1); all SplAt convs run at stride 1
    in ResNeSt-50 (avd pooling handles the stride)."""
    s = conv3x3_same(x, sp['conv'], relu=True)               # (2, N, H, W, c)
    _, N, H, W, c = s.shape
    s0 = s[0].reshape(N, H * W, c)
    s1 = s[1].reshape(N, H * W, c)
    u = global_avg_pool_sum([s0, s1])                        # gap(s0 + s1) -> (N, c)
    a0, a1 = splat_attention(u, sp)                          # rSoftMax attentions
    out = splat_combine(s0, s1, a0, a1)                      # a0*s0 + a1*s1
    return out.reshape(N, H, W, c)


def bottleneck_forward(x, blk):
    # conv1 keeps (harmless zero) pad channels; the SplAt conv only reads the
    # true channels when it stacks its radix groups.
    out = conv1x1(x, blk['conv1'], relu=True, trim_n=False)
    out = splat_forward(out, blk['splat'])
    if blk['avd']:  # avd_first=False -> pool after SplAt conv
        out = avg_pool(out, 3, blk['stride'], 1)
    if blk['downsample'] is not None:
        ds = blk['downsample']
        r = x
        if ds['pool_stride'] > 1:
            r = avg_pool(r, ds['pool_stride'], ds['pool_stride'], 0)
        r = conv1x1(r, ds['conv'], relu=False)
    else:
        r = x
    # residual add + ReLU fused into the conv3 GEMM epilogue.
    return conv1x1(out, blk['conv3'], relu=True, residual=r)


def img_encoder_forward(params, x_nchw):
    """ImgEncoder.forward: frozen ResNeSt-50 features -> Linear(2048, feature_size)."""
    N = x_nchw.shape[0]
    x = jnp.transpose(x_nchw, (0, 2, 3, 1)).astype(jnp.bfloat16)  # NCHW -> NHWC bf16
    s = params['stem']
    a, Ho, Wo = _im2col(x, 3, 3, 2, 1)                            # stem conv1 (s2, K=27)
    x = pallas_matmul_bias(a, s[0], apply_relu=True).reshape(N, Ho, Wo, s[0]['n_out'])
    x = conv3x3_same(x, s[1], relu=True)[0]
    x = conv3x3_same(x, s[2], relu=True)[0]
    x = max_pool_3x3_s2(x)
    for blocks in params['layers']:
        for blk in blocks:
            x = bottleneck_forward(x, blk)
    N, H, W, C = x.shape
    feat = global_avg_pool_sum([x.reshape(N, H * W, C)])          # (N, 2048) f32
    return pallas_matmul_bias(feat, params['fc'], apply_relu=False,
                              out_dtype=jnp.float32)


if __name__ == "__main__":
    feature_size = 64
    params = build_imgencoder_params(feature_size, seed=0)

    key = jax.random.PRNGKey(0)
    # small input consistent with the module: NCHW, 3 input channels
    x = jax.random.normal(key, (2, 3, 32, 32), jnp.float32)

    out = img_encoder_forward(params, x)
    out = jax.block_until_ready(out)

    assert out.shape == (2, feature_size), out.shape
    assert bool(jnp.all(jnp.isfinite(out)))
    print("KERNEL_OK")
</pallas_src>

<mosaic_0001>
module attributes {stable_mosaic.version = 11 : i64} {
  func.func @_matmul_bias_kernel(%arg0: i32, %arg1: i32, %arg2: i32, %arg3: memref<256x32xbf16, #tpu.memory_space<vmem>>, %arg4: memref<32x32xbf16, #tpu.memory_space<vmem>>, %arg5: memref<1x32xf32, #tpu.memory_space<vmem>>, %arg6: memref<256x32xbf16, #tpu.memory_space<vmem>>, %arg7: memref<256x32xf32, #tpu.memory_space<vmem>>) attributes {dimension_semantics = [#tpu.dimension_semantics<parallel>, #tpu.dimension_semantics<parallel>, #tpu.dimension_semantics<arbitrary>], iteration_bounds = array<i64: 2, 1, 1>, scalar_prefetch = 0 : i64, scratch_operands = 1 : i64, tpu.core_type = #tpu.core_type<tc>, window_params = [{transform_indices = @transform_0, window_bounds = array<i64: 256, 32>}, {transform_indices = @transform_1, window_bounds = array<i64: 32, 32>}, {transform_indices = @transform_2, window_bounds = array<i64: 1, 32>}, {transform_indices = @transform_3, window_bounds = array<i64: 256, 32>}]} {
    %c0_i32 = arith.constant 0 : i32
    %0 = arith.cmpi eq, %arg2, %c0_i32 : i32
    %1 = arith.extui %0 : i1 to i32
    %c0_i32_0 = arith.constant 0 : i32
    %2 = arith.cmpi ne, %1, %c0_i32_0 : i32
    scf.if %2 {
      %cst_10 = arith.constant 0.000000e+00 : f32
      %12 = vector.broadcast %cst_10 : f32 to vector<256x32xf32>
      %c0_11 = arith.constant 0 : index
      %c0_12 = arith.constant 0 : index
      %13 = vector.load %arg7[%c0_11, %c0_12] : memref<256x32xf32, #tpu.memory_space<vmem>>, vector<256x32xf32>
      tpu.vector_store %arg7[%c0_11, %c0_12], %12 {strides = array<i32>} : memref<256x32xf32, #tpu.memory_space<vmem>>, vector<256x32xf32>,
    } else {
    }
    %c0 = arith.constant 0 : index
    %c0_1 = arith.constant 0 : index
    %3 = vector.load %arg7[%c0, %c0_1] : memref<256x32xf32, #tpu.memory_space<vmem>>, vector<256x32xf32>
    %c0_2 = arith.constant 0 : index
    %c0_3 = arith.constant 0 : index
    %4 = vector.load %arg3[%c0_2, %c0_3] : memref<256x32xbf16, #tpu.memory_space<vmem>>, vector<256x32xbf16>
    %c0_4 = arith.constant 0 : index
    %c0_5 = arith.constant 0 : index
    %5 = vector.load %arg4[%c0_4, %c0_5] : memref<32x32xbf16, #tpu.memory_space<vmem>>, vector<32x32xbf16>
    %cst = arith.constant dense<0.000000e+00> : vector<256x32xf32>
    %6 = tpu.matmul %4, %5, %cst {dimension_numbers = #tpu.dot_dimension_numbers<[1], [0], [0], [1], [0, 0, 1, 1], [], []>} : vector<256x32xbf16>, vector<32x32xbf16>, vector<256x32xf32> -> vector<256x32xf32>
    %7 = arith.addf %3, %6 : vector<256x32xf32>
    %c0_6 = arith.constant 0 : index
    %c0_7 = arith.constant 0 : index
    %8 = vector.load %arg7[%c0_6, %c0_7] : memref<256x32xf32, #tpu.memory_space<vmem>>, vector<256x32xf32>
    tpu.vector_store %arg7[%c0_6, %c0_7], %7 {strides = array<i32>} : memref<256x32xf32, #tpu.memory_space<vmem>>, vector<256x32xf32>,
    %c0_i32_8 = arith.constant 0 : i32
    %9 = arith.cmpi eq, %arg2, %c0_i32_8 : i32
    %10 = arith.extui %9 : i1 to i32
    %c0_i32_9 = arith.constant 0 : i32
    %11 = arith.cmpi ne, %10, %c0_i32_9 : i32
    scf.if %11 {
      %c0_10 = arith.constant 0 : index
      %c0_11 = arith.constant 0 : index
      %12 = vector.load %arg7[%c0_10, %c0_11] : memref<256x32xf32, #tpu.memory_space<vmem>>, vector<256x32xf32>
      %c0_12 = arith.constant 0 : index
      %c0_13 = arith.constant 0 : index
      %13 = vector.load %arg5[%c0_12, %c0_13] : memref<1x32xf32, #tpu.memory_space<vmem>>, vector<1x32xf32>
      %14 = vector.broadcast %13 : vector<1x32xf32> to vector<256x32xf32>
      %15 = arith.addf %12, %14 : vector<256x32xf32>
      %cst_14 = arith.constant 0.000000e+00 : f32
      %16 = vector.broadcast %cst_14 : f32 to vector<256x32xf32>
      %17 = arith.maximumf %15, %16 : vector<256x32xf32>
      %18 = arith.truncf %17 : vector<256x32xf32> to vector<256x32xbf16>
      %c0_15 = arith.constant 0 : index
      %c0_16 = arith.constant 0 : index
      %19 = vector.load %arg6[%c0_15, %c0_16] : memref<256x32xbf16, #tpu.memory_space<vmem>>, vector<256x32xbf16>
      tpu.vector_store %arg6[%c0_15, %c0_16], %18 {strides = array<i32>} : memref<256x32xbf16, #tpu.memory_space<vmem>>, vector<256x32xbf16>,
    } else {
    }
    return
  }
  func.func @transform_0(%arg0: i32, %arg1: i32, %arg2: i32) -> (i32, i32) {
    %c0_i32 = arith.constant 0 : i32
    return %arg0, %arg2 : i32, i32
  }
  func.func @transform_1(%arg0: i32, %arg1: i32, %arg2: i32) -> (i32, i32) {
    %c0_i32 = arith.constant 0 : i32
    return %arg2, %arg1 : i32, i32
  }
  func.func @transform_2(%arg0: i32, %arg1: i32, %arg2: i32) -> (i32, i32) {
    %c0_i32 = arith.constant 0 : i32
    %c0_i32_0 = arith.constant 0 : i32
    return %c0_i32, %arg1 : i32, i32
  }
  func.func @transform_3(%arg0: i32, %arg1: i32, %arg2: i32) -> (i32, i32) {
    %c0_i32 = arith.constant 0 : i32
    return %arg0, %arg1 : i32, i32
  }
}

</mosaic_0001>

<llo_original>
// kernel: tpu_custom_call.1
$region0: #{tpu_custom_call.1}
  #allocation0 [shape = 'u32[]', space=smem, size = 0x4, offset = 0x4, fixed_abs, tag = 'smem constant byte address 0x4 - core index']
  #allocation1 [shape = 'u32[144,128]{1,0:T(1,128)}', space=vmem, size = 0x12000, scoped, tag = 'internal scratch']
  #allocation2 [shape = 'f32[256,32]{1,0:T(8,128)}', space=vmem, size = 0x20000, scoped, tag = 'scratch operand']
  %s0 = inlined_call_operand.vmem [shape: bf16[512,32], index: 0, kind: input, shape index: {}]
  %s1 = inlined_call_operand.vmem [shape: bf16[32,32], index: 1, kind: input, shape index: {}]
  %s2 = inlined_call_operand.vmem [shape: f32[1,32], index: 2, kind: input, shape index: {}]
  %s3 = inlined_call_operand.vmem [shape: bf16[512,32], index: 3, kind: output, shape index: {}]
  %s4 = sld [smem:[#allocation0]]
  $region53: #{tpu_custom_call.1} parent=0
    _
  %s6 = ssub.s32 1, %s4
  %s7 = scalar_select 0, %s6, %s4
  loop: start=0, step=1, limit=4
  $region2: #{tpu_custom_call.1} parent=0 // loop_pre_header
    _
  $region3: #{tpu_custom_call.1} parent=0 // loop_header
    %s9 = sphi 0, %s13
    %p10 = scmp.ge.s32.totalorder %s9, 4
    %s16 = sphi 0, %s35
    %s17 = sphi 0, %s31
    %s18 = sphi 0, %s27
    %s19 = sphi 0, %s16
    %s20 = sphi 0, %s17
    %s21 = sphi 0, %s18
    %s22 = sphi 0, %s19
    %s23 = sphi 0, %s20
    %s24 = sphi 0, %s21
    %s40 = sphi 0, %s42
    %s43 = sphi 0, %s40
    %s44 = sphi 0, %s43
    %s60 = sphi 0, %s44
    %s68 = sphi 0, %s70
    %s71 = sphi 0, %s68
    %s72 = sphi 0, %s71
    %s88 = sphi 0, %s72
    %s94 = sphi 0, %s96
    %s97 = sphi 0, %s94
    %s98 = sphi 0, %s97
    %s114 = sphi 0, %s98
    %s122 = sphi 0, %s124
    %s125 = sphi 0, %s122
    %s126 = sphi 0, %s125
    %s142 = sphi 0, %s126
  $region4: #{tpu_custom_call.1} parent=0 // loop_header_branch
    %12 = sbr.rel (%p10) target = $region8
  $region5: #{tpu_custom_call.1} parent=0 // loop_body
    %s14 = ssub.s32 %s9, 1
    %s15 = ssub.s32 %s9, 2
    %s25 = sadd.s32 1, %s18
    %p26 = scmp.ge.s32.totalorder %s25, 1
    %s27 = scalar_select %p26, 0, %s25
    %s28 = sadd.s32 1, %s17
    %s29 = scalar_select %p26, %s28, %s17
    %p30 = scmp.ge.s32.totalorder %s29, 1
    %s31 = scalar_select %p30, 0, %s29
    %s32 = sadd.s32 1, %s16
    %s33 = scalar_select %p30, %s32, %s16
    %p34 = scmp.ge.s32.totalorder %s33, 2
    %s35 = scalar_select %p34, 0, %s33
    %s36 = ssub.s32 %s16, %s35
    %s37 = ssub.s32 %s18, %s27
    %s38 = sor.u32 %s36, %s37
    %p39 = scmp.eq.s32.totalorder %s38, 0
    %s41 = sadd.s32 %s40, 1
    %s42 = scalar_select %p39, %s40, %s41
    %p45 = pneg %p39
    %p46 = scmp.eq.s32.totalorder %s9, 1
    %p47 = por %p45, %p46
    %p48 = scmp.ne.s32.totalorder %s40, %s43
    %p49 = scmp.eq.s32.totalorder %s9, 0
    %p50 = por %p48, %p49
    %p51 = scmp.ne.s32.totalorder %s40, %s43
    %p52 = scmp.eq.s32.totalorder %s14, 1
    %p53 = por %p51, %p52
    %p54 = scmp.ne.s32.totalorder %s43, %s44
    %p55 = scmp.eq.s32.totalorder %s14, 0
    %p56 = por %p54, %p55
    %p57 = scmp.ne.s32.totalorder %s43, %s44
    %p58 = scmp.eq.s32.totalorder %s15, 1
    %p59 = por %p57, %p58
    %p61 = scmp.ne.s32.totalorder %s44, %s60
    %p62 = scmp.eq.s32.totalorder %s15, 0
    %p63 = por %p61, %p62
    %s64 = ssub.s32 %s18, %s27
    %s65 = ssub.s32 %s17, %s31
    %s66 = sor.u32 %s64, %s65
    %p67 = scmp.eq.s32.totalorder %s66, 0
    %s69 = sadd.s32 %s68, 1
    %s70 = scalar_select %p67, %s68, %s69
    %p73 = pneg %p67
    %p74 = scmp.eq.s32.totalorder %s9, 1
    %p75 = por %p73, %p74
    %p76 = scmp.ne.s32.totalorder %s68, %s71
    %p77 = scmp.eq.s32.totalorder %s9, 0
    %p78 = por %p76, %p77
    %p79 = scmp.ne.s32.totalorder %s68, %s71
    %p80 = scmp.eq.s32.totalorder %s14, 1
    %p81 = por %p79, %p80
    %p82 = scmp.ne.s32.totalorder %s71, %s72
    %p83 = scmp.eq.s32.totalorder %s14, 0
    %p84 = por %p82, %p83
    %p85 = scmp.ne.s32.totalorder %s71, %s72
    %p86 = scmp.eq.s32.totalorder %s15, 1
    %p87 = por %p85, %p86
    %p89 = scmp.ne.s32.totalorder %s72, %s88
    %p90 = scmp.eq.s32.totalorder %s15, 0
    %p91 = por %p89, %p90
    %s92 = ssub.s32 %s17, %s31
    %p93 = scmp.eq.s32.totalorder %s92, 0
    %s95 = sadd.s32 %s94, 1
    %s96 = scalar_select %p93, %s94, %s95
    %p99 = pneg %p93
    %p100 = scmp.eq.s32.totalorder %s9, 1
    %p101 = por %p99, %p100
    %p102 = scmp.ne.s32.totalorder %s94, %s97
    %p103 = scmp.eq.s32.totalorder %s9, 0
    %p104 = por %p102, %p103
    %p105 = scmp.ne.s32.totalorder %s94, %s97
    %p106 = scmp.eq.s32.totalorder %s14, 1
    %p107 = por %p105, %p106
    %p108 = scmp.ne.s32.totalorder %s97, %s98
    %p109 = scmp.eq.s32.totalorder %s14, 0
    %p110 = por %p108, %p109
    %p111 = scmp.ne.s32.totalorder %s97, %s98
    %p112 = scmp.eq.s32.totalorder %s15, 1
    %p113 = por %p111, %p112
    %p115 = scmp.ne.s32.totalorder %s98, %s114
    %p116 = scmp.eq.s32.totalorder %s15, 0
    %p117 = por %p115, %p116
    %s118 = ssub.s32 %s16, %s35
    %s119 = ssub.s32 %s17, %s31
    %s120 = sor.u32 %s118, %s119
    %p121 = scmp.eq.s32.totalorder %s120, 0
    %s123 = sadd.s32 %s122, 1
    %s124 = scalar_select %p121, %s122, %s123
    %p127 = pneg %p121
    %p128 = scmp.eq.s32.totalorder %s9, 1
    %p129 = por %p127, %p128
    %p130 = scmp.ne.s32.totalorder %s122, %s125
    %p131 = scmp.eq.s32.totalorder %s9, 0
    %p132 = por %p130, %p131
    %p133 = scmp.ne.s32.totalorder %s122, %s125
    %p134 = scmp.eq.s32.totalorder %s14, 1
    %p135 = por %p133, %p134
    %p136 = scmp.ne.s32.totalorder %s125, %s126
    %p137 = scmp.eq.s32.totalorder %s14, 0
    %p138 = por %p136, %p137
    %p139 = scmp.ne.s32.totalorder %s125, %s126
    %p140 = scmp.eq.s32.totalorder %s15, 1
    %p141 = por %p139, %p140
    %p143 = scmp.ne.s32.totalorder %s126, %s142
    %p144 = scmp.eq.s32.totalorder %s15, 0
    %p145 = por %p143, %p144
    %p146 = scmp.le.s32.totalorder 1, %s9
    %p147 = scmp.lt.s32.totalorder %s9, 3
    %p148 = pnand %p146, %p147
    %p149 = pneg %p148
    // Predicated region
    $region9: #{tpu_custom_call.1} parent=5 // pred_check
      _
    $region10: #{tpu_custom_call.1} parent=5 // pred_check_branch
      %151 = sbr.rel (%p148) target = $region12
    $region11: #{tpu_custom_call.1} parent=5 // pred_region
      %s152 = ssub.s32 %s9, 1
      // Predicated region
      $region13: #{tpu_custom_call.1} parent=11 // pred_check
        %p153 = pneg %p84
      $region14: #{tpu_custom_call.1} parent=11 // pred_check_branch
        %155 = sbr.rel (%p153) target = $region16
      $region15: #{tpu_custom_call.1} parent=11 // pred_region
        %s156 = smul.u32 4, %s21
        %p157 = scmp.lt.s32.totalorder %s156, 3
        %s158 = scalar_select %p157, %s156, 3
        %p159 = scmp.lt.s32.totalorder %s20, 0
        %s160 = scalar_select %p159, %s20, 0
        %s161 = sadd.s32 %s160, %s158
        %s162 = smul.addr %s161, 4
        %s163 = scalar_lea.vmem %s1, %s162
        %s164 = smul.u32 4, %s21
      $region16: #{tpu_custom_call.1} parent=11 // pred_fallthru
        _
      // Predicated region
      $region17: #{tpu_custom_call.1} parent=11 // pred_check
        %p165 = pneg %p110
      $region18: #{tpu_custom_call.1} parent=11 // pred_check_branch
        %167 = sbr.rel (%p165) target = $region20
      $region19: #{tpu_custom_call.1} parent=11 // pred_region
        %p168 = scmp.lt.s32.totalorder %s20, 0
        %s169 = scalar_select %p168, %s20, 0
        %s170 = scalar_lea.vmem %s2, %s169
      $region20: #{tpu_custom_call.1} parent=11 // pred_fallthru
        _
    $region12: #{tpu_custom_call.1} parent=5 // pred_fallthru
      _
    %p171 = scmp.lt.s32.totalorder %s9, 2
    // Predicated region
    $region21: #{tpu_custom_call.1} parent=5 // pred_check
      %p172 = pneg %p171
    $region22: #{tpu_custom_call.1} parent=5 // pred_check_branch
      %174 = sbr.rel (%p172) target = $region24
    $region23: #{tpu_custom_call.1} parent=5 // pred_region
      // Predicated region
      $region25: #{tpu_custom_call.1} parent=23 // pred_check
        %p175 = pneg %p50
      $region26: #{tpu_custom_call.1} parent=23 // pred_check_branch
        %177 = sbr.rel (%p175) target = $region28
      $region27: #{tpu_custom_call.1} parent=23 // pred_region
        %s178 = smul.u32 32, %s16
        %p179 = scmp.lt.s32.totalorder %s178, 63
        %s180 = scalar_select %p179, %s178, 63
        %p181 = scmp.lt.s32.totalorder %s18, 0
        %s182 = scalar_select %p181, %s18, 0
        %s183 = sadd.s32 %s182, %s180
        %s184 = smul.addr %s183, 4
        %s185 = scalar_lea.vmem %s0, %s184
        %s186 = smul.u32 32, %s16
      $region28: #{tpu_custom_call.1} parent=23 // pred_fallthru
        _
    $region24: #{tpu_custom_call.1} parent=5 // pred_fallthru
      _
    %p187 = scmp.le.s32.totalorder 1, %s9
    %p188 = scmp.lt.s32.totalorder %s9, 3
    %p189 = pnand %p187, %p188
    %p190 = pneg %p189
    // Predicated region
    $region29: #{tpu_custom_call.1} parent=5 // pred_check
      _
    $region30: #{tpu_custom_call.1} parent=5 // pred_check_branch
      %192 = sbr.rel (%p189) target = $region32
    $region31: #{tpu_custom_call.1} parent=5 // pred_region
      %s193 = ssub.s32 %s9, 1
      %s194 = smul.u32 32, %s19
      %p195 = scmp.lt.s32.totalorder %s194, 63
      %s196 = scalar_select %p195, %s194, 63
      %p197 = scmp.lt.s32.totalorder %s21, 0
      %s198 = scalar_select %p197, %s21, 0
      %s199 = sadd.s32 %s198, %s196
      %s200 = smul.addr %s199, 4
      %s201 = scalar_lea.vmem %s0, %s200
      %p202 = pneg %p56
      %p203 = pneg %p53
      %s204 = smul.u32 4, %s21
      %p205 = scmp.lt.s32.totalorder %s204, 3
      %s206 = scalar_select %p205, %s204, 3
      %p207 = scmp.lt.s32.totalorder %s20, 0
      %s208 = scalar_select %p207, %s20, 0
      %s209 = sadd.s32 %s208, %s206
      %s210 = smul.addr %s209, 4
      %s211 = scalar_lea.vmem %s1, %s210
      %p212 = pneg %p84
      %p213 = pneg %p81
      %p214 = scmp.lt.s32.totalorder %s20, 0
      %s215 = scalar_select %p214, %s20, 0
      %s216 = scalar_lea.vmem %s2, %s215
      %p217 = pneg %p110
      %p218 = pneg %p107
      %p219 = pneg %p138
      %p220 = pneg %p135
      %s221 = smul.u32 32, %s19
      %p222 = scmp.lt.s32.totalorder %s221, 63
      %s223 = scalar_select %p222, %s221, 63
      %p224 = scmp.lt.s32.totalorder %s20, 0
      %s225 = scalar_select %p224, %s20, 0
      %s226 = sadd.s32 %s225, %s223
      %s227 = smul.addr %s226, 4
      %s228 = scalar_lea.vmem %s3, %s227
      %s229 = smul.u32 32, %s19
      %p230 = scmp.lt.s32.totalorder %s229, 63
      %s231 = scalar_select %p230, %s229, 63
      %p232 = scmp.lt.s32.totalorder %s21, 0
      %s233 = scalar_select %p232, %s21, 0
      %s234 = sadd.s32 %s233, %s231
      %s235 = smul.addr %s234, 4
      %s236 = scalar_lea.vmem %s0, %s235
      %s237 = smul.u32 32, %s19
      %s238 = smul.u32 4, %s21
      %p239 = scmp.lt.s32.totalorder %s238, 3
      %s240 = scalar_select %p239, %s238, 3
      %p241 = scmp.lt.s32.totalorder %s20, 0
      %s242 = scalar_select %p241, %s20, 0
      %s243 = sadd.s32 %s242, %s240
      %s244 = smul.addr %s243, 4
      %s245 = scalar_lea.vmem %s1, %s244
      %s246 = smul.u32 4, %s21
      %p247 = scmp.lt.s32.totalorder %s20, 0
      %s248 = scalar_select %p247, %s20, 0
      %s249 = scalar_lea.vmem %s2, %s248
      %s250 = smul.u32 32, %s19
      %p251 = scmp.lt.s32.totalorder %s250, 63
      %s252 = scalar_select %p251, %s250, 63
      %p253 = scmp.lt.s32.totalorder %s20, 0
      %s254 = scalar_select %p253, %s20, 0
      %s255 = sadd.s32 %s254, %s252
      %s256 = smul.addr %s255, 4
      %s257 = scalar_lea.vmem %s3, %s256
      %s258 = smul.u32 32, %s19
      %p260 = scmp.eq.s32.totalorder %s21, 0
      // Predicated region
      $region33: #{tpu_custom_call.1} parent=31 // pred_check
        %p261 = pneg %p260
      $region34: #{tpu_custom_call.1} parent=31 // pred_check_branch
        %263 = sbr.rel (%p261) target = $region36
      $region35: #{tpu_custom_call.1} parent=31 // pred_region
        %vm264 = vcmask 261120
        %265 = vst.msk [vmem:[#allocation2] sm:$0xff] %vm264, 0.0
        %266 = vst.msk [vmem:[#allocation2 + $0x8] sm:$0xff] %vm264, 0.0
        %267 = vst.msk [vmem:[#allocation2 + $0x10] sm:$0xff] %vm264, 0.0
        %268 = vst.msk [vmem:[#allocation2 + $0x18] sm:$0xff] %vm264, 0.0
        %269 = vst.msk [vmem:[#allocation2 + $0x20] sm:$0xff] %vm264, 0.0
        %270 = vst.msk [vmem:[#allocation2 + $0x28] sm:$0xff] %vm264, 0.0
        %271 = vst.msk [vmem:[#allocation2 + $0x30] sm:$0xff] %vm264, 0.0
        %272 = vst.msk [vmem:[#allocation2 + $0x38] sm:$0xff] %vm264, 0.0
        %273 = vst.msk [vmem:[#allocation2 + $0x40] sm:$0xff] %vm264, 0.0
        %274 = vst.msk [vmem:[#allocation2 + $0x48] sm:$0xff] %vm264, 0.0
        %275 = vst.msk [vmem:[#allocation2 + $0x50] sm:$0xff] %vm264, 0.0
        %276 = vst.msk [vmem:[#allocation2 + $0x58] sm:$0xff] %vm264, 0.0
        %277 = vst.msk [vmem:[#allocation2 + $0x60] sm:$0xff] %vm264, 0.0
        %278 = vst.msk [vmem:[#allocation2 + $0x68] sm:$0xff] %vm264, 0.0
        %279 = vst.msk [vmem:[#allocation2 + $0x70] sm:$0xff] %vm264, 0.0
        %280 = vst.msk [vmem:[#allocation2 + $0x78] sm:$0xff] %vm264, 0.0
        %281 = vst.msk [vmem:[#allocation2 + $0x80] sm:$0xff] %vm264, 0.0
        %282 = vst.msk [vmem:[#allocation2 + $0x88] sm:$0xff] %vm264, 0.0
        %283 = vst.msk [vmem:[#allocation2 + $0x90] sm:$0xff] %vm264, 0.0
        %284 = vst.msk [vmem:[#allocation2 + $0x98] sm:$0xff] %vm264, 0.0
        %285 = vst.msk [vmem:[#allocation2 + $0xa0] sm:$0xff] %vm264, 0.0
        %286 = vst.msk [vmem:[#allocation2 + $0xa8] sm:$0xff] %vm264, 0.0
        %287 = vst.msk [vmem:[#allocation2 + $0xb0] sm:$0xff] %vm264, 0.0
        %288 = vst.msk [vmem:[#allocation2 + $0xb8] sm:$0xff] %vm264, 0.0
        %289 = vst.msk [vmem:[#allocation2 + $0xc0] sm:$0xff] %vm264, 0.0
        %290 = vst.msk [vmem:[#allocation2 + $0xc8] sm:$0xff] %vm264, 0.0
        %291 = vst.msk [vmem:[#allocation2 + $0xd0] sm:$0xff] %vm264, 0.0
        %292 = vst.msk [vmem:[#allocation2 + $0xd8] sm:$0xff] %vm264, 0.0
        %293 = vst.msk [vmem:[#allocation2 + $0xe0] sm:$0xff] %vm264, 0.0
        %294 = vst.msk [vmem:[#allocation2 + $0xe8] sm:$0xff] %vm264, 0.0
        %295 = vst.msk [vmem:[#allocation2 + $0xf0] sm:$0xff] %vm264, 0.0
        %296 = vst.msk [vmem:[#allocation2 + $0xf8] sm:$0xff] %vm264, 0.0
      $region36: #{tpu_custom_call.1} parent=31 // pred_fallthru
        _
      %v297 = vld [vmem:[#allocation2] sm:$0xff]
      %v298 = vld [vmem:[#allocation2 + $0x8] sm:$0xff]
      %v299 = vld [vmem:[#allocation2 + $0x10] sm:$0xff]
      %v300 = vld [vmem:[#allocation2 + $0x18] sm:$0xff]
      %v301 = vld [vmem:[#allocation2 + $0x20] sm:$0xff]
      %v302 = vld [vmem:[#allocation2 + $0x28] sm:$0xff]
      %v303 = vld [vmem:[#allocation2 + $0x30] sm:$0xff]
      %v304 = vld [vmem:[#allocation2 + $0x38] sm:$0xff]
      %v305 = vld [vmem:[#allocation2 + $0x40] sm:$0xff]
      %v306 = vld [vmem:[#allocation2 + $0x48] sm:$0xff]
      %v307 = vld [vmem:[#allocation2 + $0x50] sm:$0xff]
      %v308 = vld [vmem:[#allocation2 + $0x58] sm:$0xff]
      %v309 = vld [vmem:[#allocation2 + $0x60] sm:$0xff]
      %v310 = vld [vmem:[#allocation2 + $0x68] sm:$0xff]
      %v311 = vld [vmem:[#allocation2 + $0x70] sm:$0xff]
      %v312 = vld [vmem:[#allocation2 + $0x78] sm:$0xff]
      %v313 = vld [vmem:[#allocation2 + $0x80] sm:$0xff]
      %v314 = vld [vmem:[#allocation2 + $0x88] sm:$0xff]
      %v315 = vld [vmem:[#allocation2 + $0x90] sm:$0xff]
      %v316 = vld [vmem:[#allocation2 + $0x98] sm:$0xff]
      %v317 = vld [vmem:[#allocation2 + $0xa0] sm:$0xff]
      %v318 = vld [vmem:[#allocation2 + $0xa8] sm:$0xff]
      %v319 = vld [vmem:[#allocation2 + $0xb0] sm:$0xff]
      %v320 = vld [vmem:[#allocation2 + $0xb8] sm:$0xff]
      %v321 = vld [vmem:[#allocation2 + $0xc0] sm:$0xff]
      %v322 = vld [vmem:[#allocation2 + $0xc8] sm:$0xff]
      %v323 = vld [vmem:[#allocation2 + $0xd0] sm:$0xff]
      %v324 = vld [vmem:[#allocation2 + $0xd8] sm:$0xff]
      %v325 = vld [vmem:[#allocation2 + $0xe0] sm:$0xff]
      %v326 = vld [vmem:[#allocation2 + $0xe8] sm:$0xff]
      %v327 = vld [vmem:[#allocation2 + $0xf0] sm:$0xff]
      %v328 = vld [vmem:[#allocation2 + $0xf8] sm:$0xff]
      %v329 = vld [vmem:[%s236] sm:$0xf]
      %v330 = vld [vmem:[%s236 + $0x4] sm:$0xf]
      %v331 = vld [vmem:[%s236 + $0x8] sm:$0xf]
      %v332 = vld [vmem:[%s236 + $0xc] sm:$0xf]
      %v333 = vld [vmem:[%s236 + $0x10] sm:$0xf]
      %v334 = vld [vmem:[%s236 + $0x14] sm:$0xf]
      %v335 = vld [vmem:[%s236 + $0x18] sm:$0xf]
      %v336 = vld [vmem:[%s236 + $0x1c] sm:$0xf]
      %v337 = vld [vmem:[%s236 + $0x20] sm:$0xf]
      %v338 = vld [vmem:[%s236 + $0x24] sm:$0xf]
      %v339 = vld [vmem:[%s236 + $0x28] sm:$0xf]
      %v340 = vld [vmem:[%s236 + $0x2c] sm:$0xf]
      %v341 = vld [vmem:[%s236 + $0x30] sm:$0xf]
      %v342 = vld [vmem:[%s236 + $0x34] sm:$0xf]
      %v343 = vld [vmem:[%s236 + $0x38] sm:$0xf]
      %v344 = vld [vmem:[%s236 + $0x3c] sm:$0xf]
      %v345 = vld [vmem:[%s236 + $0x40] sm:$0xf]
      %v346 = vld [vmem:[%s236 + $0x44] sm:$0xf]
      %v347 = vld [vmem:[%s236 + $0x48] sm:$0xf]
      %v348 = vld [vmem:[%s236 + $0x4c] sm:$0xf]
      %v349 = vld [vmem:[%s236 + $0x50] sm:$0xf]
      %v350 = vld [vmem:[%s236 + $0x54] sm:$0xf]
      %v351 = vld [vmem:[%s236 + $0x58] sm:$0xf]
      %v352 = vld [vmem:[%s236 + $0x5c] sm:$0xf]
      %v353 = vld [vmem:[%s236 + $0x60] sm:$0xf]
      %v354 = vld [vmem:[%s236 + $0x64] sm:$0xf]
      %v355 = vld [vmem:[%s236 + $0x68] sm:$0xf]
      %v356 = vld [vmem:[%s236 + $0x6c] sm:$0xf]
      %v357 = vld [vmem:[%s236 + $0x70] sm:$0xf]
      %v358 = vld [vmem:[%s236 + $0x74] sm:$0xf]
      %v359 = vld [vmem:[%s236 + $0x78] sm:$0xf]
      %v360 = vld [vmem:[%s236 + $0x7c] sm:$0xf]
      %v361 = vld [vmem:[%s245] sm:$0xf]
      %v362 = vld [vmem:[%s245 + $0x4] sm:$0xf]
      %v363 = vld [vmem:[%s245 + $0x8] sm:$0xf]
      %v364 = vld [vmem:[%s245 + $0xc] sm:$0xf]
      %v397 = vunpack.c.l.b16 %v329
      %v398 = vunpack.c.l.b16 %v330
      %v399 = vunpack.c.l.b16 %v331
      %v400 = vunpack.c.l.b16 %v332
      %v401 = vunpack.c.l.b16 %v333
      %v402 = vunpack.c.l.b16 %v334
      %v403 = vunpack.c.l.b16 %v335
      %v404 = vunpack.c.l.b16 %v336
      %v405 = vunpack.c.l.b16 %v337
      %v406 = vunpack.c.l.b16 %v338
      %v407 = vunpack.c.l.b16 %v339
      %v408 = vunpack.c.l.b16 %v340
      %v409 = vunpack.c.l.b16 %v341
      %v410 = vunpack.c.l.b16 %v342
      %v411 = vunpack.c.l.b16 %v343
      %v412 = vunpack.c.l.b16 %v344
      %v413 = vunpack.c.l.b16 %v345
      %v414 = vunpack.c.l.b16 %v346
      %v415 = vunpack.c.l.b16 %v347
      %v416 = vunpack.c.l.b16 %v348
      %v417 = vunpack.c.l.b16 %v349
      %v418 = vunpack.c.l.b16 %v350
      %v419 = vunpack.c.l.b16 %v351
      %v420 = vunpack.c.l.b16 %v352
      %v421 = vunpack.c.l.b16 %v353
      %v422 = vunpack.c.l.b16 %v354
      %v423 = vunpack.c.l.b16 %v355
      %v424 = vunpack.c.l.b16 %v356
      %v425 = vunpack.c.l.b16 %v357
      %v426 = vunpack.c.l.b16 %v358
      %v427 = vunpack.c.l.b16 %v359
      %v428 = vunpack.c.l.b16 %v360
      %v429 = vpack.c.b16 %v398, %v397
      %v430 = vpack.c.b16 %v400, %v399
      %v431 = vpack.c.b16 %v402, %v401
      %v432 = vpack.c.b16 %v404, %v403
      %v433 = vpack.c.b16 %v406, %v405
      %v434 = vpack.c.b16 %v408, %v407
      %v435 = vpack.c.b16 %v410, %v409
      %v436 = vpack.c.b16 %v412, %v411
      %v437 = vpack.c.b16 %v414, %v413
      %v438 = vpack.c.b16 %v416, %v415
      %v439 = vpack.c.b16 %v418, %v417
      %v440 = vpack.c.b16 %v420, %v419
      %v441 = vpack.c.b16 %v422, %v421
      %v442 = vpack.c.b16 %v424, %v423
      %v443 = vpack.c.b16 %v426, %v425
      %v444 = vpack.c.b16 %v428, %v427
      %v449 = vunpack.c.l.b16 %v361
      %v450 = vunpack.c.l.b16 %v362
      %v451 = vunpack.c.l.b16 %v363
      %v452 = vunpack.c.l.b16 %v364
      %v453 = vpack.c.b16 %v450, %v449
      %v454 = vpack.c.b16 %v452, %v451
      %vm457 = vcmask 261120
      %v459 = vsel %vm457, %v429, 0
      %v462 = vsel %vm457, %v430, 0
      %v465 = vsel %vm457, %v431, 0
      %v468 = vsel %vm457, %v432, 0
      %v471 = vsel %vm457, %v433, 0
      %v474 = vsel %vm457, %v434, 0
      %v477 = vsel %vm457, %v435, 0
      %v480 = vsel %vm457, %v436, 0
      %v483 = vsel %vm457, %v437, 0
      %v486 = vsel %vm457, %v438, 0
      %v489 = vsel %vm457, %v439, 0
      %v492 = vsel %vm457, %v440, 0
      %v495 = vsel %vm457, %v441, 0
      %v498 = vsel %vm457, %v442, 0
      %v501 = vsel %vm457, %v443, 0
      %v504 = vsel %vm457, %v444, 0
      %506 = vmatprep.subr.bf16.mxu0 0
      %507 = vmatpush1.bf16.msra.mxu0 0
      %508 = vmatprep.subr.bf16.mxu0 0
      %509 = vmatpush1.bf16.msra.mxu0 0
      %510 = vmatprep.subr.bf16.mxu0 0
      %511 = vmatpush1.bf16.msra.mxu0 0
      %512 = vmatprep.subr.bf16.mxu0 0
      %513 = vmatpush1.bf16.msra.mxu0 0
      %514 = vmatprep.subr.bf16.mxu0 0
      %515 = vmatpush1.bf16.msra.mxu0 0
      %516 = vmatprep.subr.bf16.mxu0 0
      %517 = vmatpush1.bf16.msra.mxu0 0
      %518 = vmatprep.subr.bf16.mxu0 0
      %519 = vmatpush1.bf16.msra.mxu0 %v454
      %520 = vmatprep.subr.bf16.mxu0 0
      %521 = vmatpush1.bf16.msra.mxu0 %v453
      %522 = vmatprep.subr.bf16.mxu0 0
      %523 = vmatpush2.bf16.msra.mxu0 0
      %524 = vmatprep.subr.bf16.mxu0 0
      %525 = vmatpush2.bf16.msra.mxu0 0
      %526 = vmatprep.subr.bf16.mxu0 0
      %527 = vmatpush2.bf16.msra.mxu0 0
      %528 = vmatprep.subr.bf16.mxu0 0
      %529 = vmatpush2.bf16.msra.mxu0 0
      %530 = vmatprep.subr.bf16.mxu0 0
      %531 = vmatpush2.bf16.msra.mxu0 0
      %532 = vmatprep.subr.bf16.mxu0 0
      %533 = vmatpush2.bf16.msra.mxu0 0
      %534 = vmatprep.subr.bf16.mxu0 0
      %535 = vmatpush2.bf16.msra.mxu0 0
      %536 = vmatprep.subr.bf16.mxu0 0
      %537 = vmatpush2.bf16.msra.mxu0 0
      %538 = vmatprep.mubr.bf16.mxu0 0
      %539 = vmatmul.mubr.bf16.gmra.mxu0 %v459
      %v540 = vpop.f32.mrf.mxu0
      %v541 = vadd.f32 0.0, %v540
      %v542 = vpop.f32.mrf.mxu0
      %v543 = vpop.f32.mrf.mxu0
      %v544 = vadd.f32 0.0, %v543
      %v545 = vpop.f32.mrf.mxu0
      %546 = vmatprep.mubr.bf16.mxu0 0
      %547 = vmatmul.mubr.bf16.gmra.mxu0 %v462
      %v548 = vpop.f32.mrf.mxu0
      %v549 = vadd.f32 0.0, %v548
      %v550 = vpop.f32.mrf.mxu0
      %v551 = vpop.f32.mrf.mxu0
      %v552 = vadd.f32 0.0, %v551
      %v553 = vpop.f32.mrf.mxu0
      %554 = vmatprep.mubr.bf16.mxu0 0
      %555 = vmatmul.mubr.bf16.gmra.mxu0 %v465
      %v556 = vpop.f32.mrf.mxu0
      %v557 = vadd.f32 0.0, %v556
      %v558 = vpop.f32.mrf.mxu0
      %v559 = vpop.f32.mrf.mxu0
      %v560 = vadd.f32 0.0, %v559
      %v561 = vpop.f32.mrf.mxu0
      %562 = vmatprep.mubr.bf16.mxu0 0
      %563 = vmatmul.mubr.bf16.gmra.mxu0 %v468
      %v564 = vpop.f32.mrf.mxu0
      %v565 = vadd.f32 0.0, %v564
      %v566 = vpop.f32.mrf.mxu0
      %v567 = vpop.f32.mrf.mxu0
      %v568 = vadd.f32 0.0, %v567
      %v569 = vpop.f32.mrf.mxu0
      %570 = vmatprep.mubr.bf16.mxu0 0
      %571 = vmatmul.mubr.bf16.gmra.mxu0 %v471
      %v572 = vpop.f32.mrf.mxu0
      %v573 = vadd.f32 0.0, %v572
      %v574 = vpop.f32.mrf.mxu0
      %v575 = vpop.f32.mrf.mxu0
      %v576 = vadd.f32 0.0, %v575
      %v577 = vpop.f32.mrf.mxu0
      %578 = vmatprep.mubr.bf16.mxu0 0
      %579 = vmatmul.mubr.bf16.gmra.mxu0 %v474
      %v580 = vpop.f32.mrf.mxu0
      %v581 = vadd.f32 0.0, %v580
      %v582 = vpop.f32.mrf.mxu0
      %v583 = vpop.f32.mrf.mxu0
      %v584 = vadd.f32 0.0, %v583
      %v585 = vpop.f32.mrf.mxu0
      %586 = vmatprep.mubr.bf16.mxu0 0
      %587 = vmatmul.mubr.bf16.gmra.mxu0 %v477
      %v588 = vpop.f32.mrf.mxu0
      %v589 = vadd.f32 0.0, %v588
      %v590 = vpop.f32.mrf.mxu0
      %v591 = vpop.f32.mrf.mxu0
      %v592 = vadd.f32 0.0, %v591
      %v593 = vpop.f32.mrf.mxu0
      %594 = vmatprep.mubr.bf16.mxu0 0
      %595 = vmatmul.mubr.bf16.gmra.mxu0 %v480
      %v596 = vpop.f32.mrf.mxu0
      %v597 = vadd.f32 0.0, %v596
      %v598 = vpop.f32.mrf.mxu0
      %v599 = vpop.f32.mrf.mxu0
      %v600 = vadd.f32 0.0, %v599
      %v601 = vpop.f32.mrf.mxu0
      %602 = vmatprep.mubr.bf16.mxu0 0
      %603 = vmatmul.mubr.bf16.gmra.mxu0 %v483
      %v604 = vpop.f32.mrf.mxu0
      %v605 = vadd.f32 0.0, %v604
      %v606 = vpop.f32.mrf.mxu0
      %v607 = vpop.f32.mrf.mxu0
      %v608 = vadd.f32 0.0, %v607
      %v609 = vpop.f32.mrf.mxu0
      %610 = vmatprep.mubr.bf16.mxu0 0
      %611 = vmatmul.mubr.bf16.gmra.mxu0 %v486
      %v612 = vpop.f32.mrf.mxu0
      %v613 = vadd.f32 0.0, %v612
      %v614 = vpop.f32.mrf.mxu0
      %v615 = vpop.f32.mrf.mxu0
      %v616 = vadd.f32 0.0, %v615
      %v617 = vpop.f32.mrf.mxu0
      %618 = vmatprep.mubr.bf16.mxu0 0
      %619 = vmatmul.mubr.bf16.gmra.mxu0 %v489
      %v620 = vpop.f32.mrf.mxu0
      %v621 = vadd.f32 0.0, %v620
      %v622 = vpop.f32.mrf.mxu0
      %v623 = vpop.f32.mrf.mxu0
      %v624 = vadd.f32 0.0, %v623
      %v625 = vpop.f32.mrf.mxu0
      %626 = vmatprep.mubr.bf16.mxu0 0
      %627 = vmatmul.mubr.bf16.gmra.mxu0 %v492
      %v628 = vpop.f32.mrf.mxu0
      %v629 = vadd.f32 0.0, %v628
      %v630 = vpop.f32.mrf.mxu0
      %v631 = vpop.f32.mrf.mxu0
      %v632 = vadd.f32 0.0, %v631
      %v633 = vpop.f32.mrf.mxu0
      %634 = vmatprep.mubr.bf16.mxu0 0
      %635 = vmatmul.mubr.bf16.gmra.mxu0 %v495
      %v636 = vpop.f32.mrf.mxu0
      %v637 = vadd.f32 0.0, %v636
      %v638 = vpop.f32.mrf.mxu0
      %v639 = vpop.f32.mrf.mxu0
      %v640 = vadd.f32 0.0, %v639
      %v641 = vpop.f32.mrf.mxu0
      %642 = vmatprep.mubr.bf16.mxu0 0
      %643 = vmatmul.mubr.bf16.gmra.mxu0 %v498
      %v644 = vpop.f32.mrf.mxu0
      %v645 = vadd.f32 0.0, %v644
      %v646 = vpop.f32.mrf.mxu0
      %v647 = vpop.f32.mrf.mxu0
      %v648 = vadd.f32 0.0, %v647
      %v649 = vpop.f32.mrf.mxu0
      %650 = vmatprep.mubr.bf16.mxu0 0
      %651 = vmatmul.mubr.bf16.gmra.mxu0 %v501
      %v652 = vpop.f32.mrf.mxu0
      %v653 = vadd.f32 0.0, %v652
      %v654 = vpop.f32.mrf.mxu0
      %v655 = vpop.f32.mrf.mxu0
      %v656 = vadd.f32 0.0, %v655
      %v657 = vpop.f32.mrf.mxu0
      %658 = vmatprep.mubr.bf16.mxu0 0
      %659 = vmatmul.mubr.bf16.gmra.mxu0 %v504
      %v660 = vpop.f32.mrf.mxu0
      %v661 = vadd.f32 0.0, %v660
      %v662 = vpop.f32.mrf.mxu0
      %v663 = vpop.f32.mrf.mxu0
      %v664 = vadd.f32 0.0, %v663
      %v665 = vpop.f32.mrf.mxu0
      %666 = vdwg.mxu0
      %v667 = vadd.f32 %v297, %v541
      %v668 = vadd.f32 %v298, %v544
      %v669 = vadd.f32 %v299, %v549
      %v670 = vadd.f32 %v300, %v552
      %v671 = vadd.f32 %v301, %v557
      %v672 = vadd.f32 %v302, %v560
      %v673 = vadd.f32 %v303, %v565
      %v674 = vadd.f32 %v304, %v568
      %v675 = vadd.f32 %v305, %v573
      %v676 = vadd.f32 %v306, %v576
      %v677 = vadd.f32 %v307, %v581
      %v678 = vadd.f32 %v308, %v584
      %v679 = vadd.f32 %v309, %v589
      %v680 = vadd.f32 %v310, %v592
      %v681 = vadd.f32 %v311, %v597
      %v682 = vadd.f32 %v312, %v600
      %v683 = vadd.f32 %v313, %v605
      %v684 = vadd.f32 %v314, %v608
      %v685 = vadd.f32 %v315, %v613
      %v686 = vadd.f32 %v316, %v616
      %v687 = vadd.f32 %v317, %v621
      %v688 = vadd.f32 %v318, %v624
      %v689 = vadd.f32 %v319, %v629
      %v690 = vadd.f32 %v320, %v632
      %v691 = vadd.f32 %v321, %v637
      %v692 = vadd.f32 %v322, %v640
      %v693 = vadd.f32 %v323, %v645
      %v694 = vadd.f32 %v324, %v648
      %v695 = vadd.f32 %v325, %v653
      %v696 = vadd.f32 %v326, %v656
      %v697 = vadd.f32 %v327, %v661
      %v698 = vadd.f32 %v328, %v664
      %699 = vst.msk [vmem:[#allocation2] sm:$0xff] %vm457, %v667
      %700 = vst.msk [vmem:[#allocation2 + $0x8] sm:$0xff] %vm457, %v668
      %701 = vst.msk [vmem:[#allocation2 + $0x10] sm:$0xff] %vm457, %v669
      %702 = vst.msk [vmem:[#allocation2 + $0x18] sm:$0xff] %vm457, %v670
      %703 = vst.msk [vmem:[#allocation2 + $0x20] sm:$0xff] %vm457, %v671
      %704 = vst.msk [vmem:[#allocation2 + $0x28] sm:$0xff] %vm457, %v672
      %705 = vst.msk [vmem:[#allocation2 + $0x30] sm:$0xff] %vm457, %v673
      %706 = vst.msk [vmem:[#allocation2 + $0x38] sm:$0xff] %vm457, %v674
      %707 = vst.msk [vmem:[#allocation2 + $0x40] sm:$0xff] %vm457, %v675
      %708 = vst.msk [vmem:[#allocation2 + $0x48] sm:$0xff] %vm457, %v676
      %709 = vst.msk [vmem:[#allocation2 + $0x50] sm:$0xff] %vm457, %v677
      %710 = vst.msk [vmem:[#allocation2 + $0x58] sm:$0xff] %vm457, %v678
      %711 = vst.msk [vmem:[#allocation2 + $0x60] sm:$0xff] %vm457, %v679
      %712 = vst.msk [vmem:[#allocation2 + $0x68] sm:$0xff] %vm457, %v680
      %713 = vst.msk [vmem:[#allocation2 + $0x70] sm:$0xff] %vm457, %v681
      %714 = vst.msk [vmem:[#allocation2 + $0x78] sm:$0xff] %vm457, %v682
      %715 = vst.msk [vmem:[#allocation2 + $0x80] sm:$0xff] %vm457, %v683
      %716 = vst.msk [vmem:[#allocation2 + $0x88] sm:$0xff] %vm457, %v684
      %717 = vst.msk [vmem:[#allocation2 + $0x90] sm:$0xff] %vm457, %v685
      %718 = vst.msk [vmem:[#allocation2 + $0x98] sm:$0xff] %vm457, %v686
      %719 = vst.msk [vmem:[#allocation2 + $0xa0] sm:$0xff] %vm457, %v687
      %720 = vst.msk [vmem:[#allocation2 + $0xa8] sm:$0xff] %vm457, %v688
      %721 = vst.msk [vmem:[#allocation2 + $0xb0] sm:$0xff] %vm457, %v689
      %722 = vst.msk [vmem:[#allocation2 + $0xb8] sm:$0xff] %vm457, %v690
      %723 = vst.msk [vmem:[#allocation2 + $0xc0] sm:$0xff] %vm457, %v691
      %724 = vst.msk [vmem:[#allocation2 + $0xc8] sm:$0xff] %vm457, %v692
      %725 = vst.msk [vmem:[#allocation2 + $0xd0] sm:$0xff] %vm457, %v693
      %726 = vst.msk [vmem:[#allocation2 + $0xd8] sm:$0xff] %vm457, %v694
      %727 = vst.msk [vmem:[#allocation2 + $0xe0] sm:$0xff] %vm457, %v695
      %728 = vst.msk [vmem:[#allocation2 + $0xe8] sm:$0xff] %vm457, %v696
      %729 = vst.msk [vmem:[#allocation2 + $0xf0] sm:$0xff] %vm457, %v697
      %730 = vst.msk [vmem:[#allocation2 + $0xf8] sm:$0xff] %vm457, %v698
      // Predicated region
      $region37: #{tpu_custom_call.1} parent=31 // pred_check
        %p731 = pneg %p260
      $region38: #{tpu_custom_call.1} parent=31 // pred_check_branch
        %733 = sbr.rel (%p731) target = $region40
      $region39: #{tpu_custom_call.1} parent=31 // pred_region
        %v734 = vld [vmem:[#allocation2] sm:$0xff]
        %v735 = vld [vmem:[#allocation2 + $0x8] sm:$0xff]
        %v736 = vld [vmem:[#allocation2 + $0x10] sm:$0xff]
        %v737 = vld [vmem:[#allocation2 + $0x18] sm:$0xff]
        %v738 = vld [vmem:[#allocation2 + $0x20] sm:$0xff]
        %v739 = vld [vmem:[#allocation2 + $0x28] sm:$0xff]
        %v740 = vld [vmem:[#allocation2 + $0x30] sm:$0xff]
        %v741 = vld [vmem:[#allocation2 + $0x38] sm:$0xff]
        %v742 = vld [vmem:[#allocation2 + $0x40] sm:$0xff]
        %v743 = vld [vmem:[#allocation2 + $0x48] sm:$0xff]
        %v744 = vld [vmem:[#allocation2 + $0x50] sm:$0xff]
        %v745 = vld [vmem:[#allocation2 + $0x58] sm:$0xff]
        %v746 = vld [vmem:[#allocation2 + $0x60] sm:$0xff]
        %v747 = vld [vmem:[#allocation2 + $0x68] sm:$0xff]
        %v748 = vld [vmem:[#allocation2 + $0x70] sm:$0xff]
        %v749 = vld [vmem:[#allocation2 + $0x78] sm:$0xff]
        %v750 = vld [vmem:[#allocation2 + $0x80] sm:$0xff]
        %v751 = vld [vmem:[#allocation2 + $0x88] sm:$0xff]
        %v752 = vld [vmem:[#allocation2 + $0x90] sm:$0xff]
        %v753 = vld [vmem:[#allocation2 + $0x98] sm:$0xff]
        %v754 = vld [vmem:[#allocation2 + $0xa0] sm:$0xff]
        %v755 = vld [vmem:[#allocation2 + $0xa8] sm:$0xff]
        %v756 = vld [vmem:[#allocation2 + $0xb0] sm:$0xff]
        %v757 = vld [vmem:[#allocation2 + $0xb8] sm:$0xff]
        %v758 = vld [vmem:[#allocation2 + $0xc0] sm:$0xff]
        %v759 = vld [vmem:[#allocation2 + $0xc8] sm:$0xff]
        %v760 = vld [vmem:[#allocation2 + $0xd0] sm:$0xff]
        %v761 = vld [vmem:[#allocation2 + $0xd8] sm:$0xff]
        %v762 = vld [vmem:[#allocation2 + $0xe0] sm:$0xff]
        %v763 = vld [vmem:[#allocation2 + $0xe8] sm:$0xff]
        %v764 = vld [vmem:[#allocation2 + $0xf0] sm:$0xff]
        %v765 = vld [vmem:[#allocation2 + $0xf8] sm:$0xff]
        %v766 = vld [vmem:[%s249] sm:$0x1]
        %v768 = vlaneseq
        %v769 = vshrl.u32 %v768, 7
        %v770 = vsub.s32 0, %v769
        %v771 = vrot.slane %v766, %v770
        %v773 = vadd.f32 %v734, %v771
        %v774 = vadd.f32 %v735, %v771
        %v775 = vadd.f32 %v736, %v771
        %v776 = vadd.f32 %v737, %v771
        %v777 = vadd.f32 %v738, %v771
        %v778 = vadd.f32 %v739, %v771
        %v779 = vadd.f32 %v740, %v771
        %v780 = vadd.f32 %v741, %v771
        %v781 = vadd.f32 %v742, %v771
        %v782 = vadd.f32 %v743, %v771
        %v783 = vadd.f32 %v744, %v771
        %v784 = vadd.f32 %v745, %v771
        %v785 = vadd.f32 %v746, %v771
        %v786 = vadd.f32 %v747, %v771
        %v787 = vadd.f32 %v748, %v771
        %v788 = vadd.f32 %v749, %v771
        %v789 = vadd.f32 %v750, %v771
        %v790 = vadd.f32 %v751, %v771
        %v791 = vadd.f32 %v752, %v771
        %v792 = vadd.f32 %v753, %v771
        %v793 = vadd.f32 %v754, %v771
        %v794 = vadd.f32 %v755, %v771
        %v795 = vadd.f32 %v756, %v771
        %v796 = vadd.f32 %v757, %v771
        %v797 = vadd.f32 %v758, %v771
        %v798 = vadd.f32 %v759, %v771
        %v799 = vadd.f32 %v760, %v771
        %v800 = vadd.f32 %v761, %v771
        %v801 = vadd.f32 %v762, %v771
        %v802 = vadd.f32 %v763, %v771
        %v803 = vadd.f32 %v764, %v771
        %v804 = vadd.f32 %v765, %v771
        %v805 = vmax.f32 %v773, 0.0
        %v806 = vmax.f32 %v774, 0.0
        %v807 = vmax.f32 %v775, 0.0
        %v808 = vmax.f32 %v776, 0.0
        %v809 = vmax.f32 %v777, 0.0
        %v810 = vmax.f32 %v778, 0.0
        %v811 = vmax.f32 %v779, 0.0
        %v812 = vmax.f32 %v780, 0.0
        %v813 = vmax.f32 %v781, 0.0
        %v814 = vmax.f32 %v782, 0.0
        %v815 = vmax.f32 %v783, 0.0
        %v816 = vmax.f32 %v784, 0.0
        %v817 = vmax.f32 %v785, 0.0
        %v818 = vmax.f32 %v786, 0.0
        %v819 = vmax.f32 %v787, 0.0
        %v820 = vmax.f32 %v788, 0.0
        %v821 = vmax.f32 %v789, 0.0
        %v822 = vmax.f32 %v790, 0.0
        %v823 = vmax.f32 %v791, 0.0
        %v824 = vmax.f32 %v792, 0.0
        %v825 = vmax.f32 %v793, 0.0
        %v826 = vmax.f32 %v794, 0.0
        %v827 = vmax.f32 %v795, 0.0
        %v828 = vmax.f32 %v796, 0.0
        %v829 = vmax.f32 %v797, 0.0
        %v830 = vmax.f32 %v798, 0.0
        %v831 = vmax.f32 %v799, 0.0
        %v832 = vmax.f32 %v800, 0.0
        %v833 = vmax.f32 %v801, 0.0
        %v834 = vmax.f32 %v802, 0.0
        %v835 = vmax.f32 %v803, 0.0
        %v836 = vmax.f32 %v804, 0.0
        %v837 = vpack.c.bf16 %v806, %v805
        %v838 = vpack.c.bf16 %v808, %v807
        %v839 = vpack.c.bf16 %v810, %v809
        %v840 = vpack.c.bf16 %v812, %v811
        %v841 = vpack.c.bf16 %v814, %v813
        %v842 = vpack.c.bf16 %v816, %v815
        %v843 = vpack.c.bf16 %v818, %v817
        %v844 = vpack.c.bf16 %v820, %v819
        %v845 = vpack.c.bf16 %v822, %v821
        %v846 = vpack.c.bf16 %v824, %v823
        %v847 = vpack.c.bf16 %v826, %v825
        %v848 = vpack.c.bf16 %v828, %v827
        %v849 = vpack.c.bf16 %v830, %v829
        %v850 = vpack.c.bf16 %v832, %v831
        %v851 = vpack.c.bf16 %v834, %v833
        %v852 = vpack.c.bf16 %v836, %v835
        %v869 = vunpack.c.l.b16 %v837
        %v870 = vunpack.c.h.b16 %v837
        %v871 = vunpack.c.l.b16 %v838
        %v872 = vunpack.c.h.b16 %v838
        %v873 = vunpack.c.l.b16 %v839
        %v874 = vunpack.c.h.b16 %v839
        %v875 = vunpack.c.l.b16 %v840
        %v876 = vunpack.c.h.b16 %v840
        %v877 = vunpack.c.l.b16 %v841
        %v878 = vunpack.c.h.b16 %v841
        %v879 = vunpack.c.l.b16 %v842
        %v880 = vunpack.c.h.b16 %v842
        %v881 = vunpack.c.l.b16 %v843
        %v882 = vunpack.c.h.b16 %v843
        %v883 = vunpack.c.l.b16 %v844
        %v884 = vunpack.c.h.b16 %v844
        %v885 = vunpack.c.l.b16 %v845
        %v886 = vunpack.c.h.b16 %v845
        %v887 = vunpack.c.l.b16 %v846
        %v888 = vunpack.c.h.b16 %v846
        %v889 = vunpack.c.l.b16 %v847
        %v890 = vunpack.c.h.b16 %v847
        %v891 = vunpack.c.l.b16 %v848
        %v892 = vunpack.c.h.b16 %v848
        %v893 = vunpack.c.l.b16 %v849
        %v894 = vunpack.c.h.b16 %v849
        %v895 = vunpack.c.l.b16 %v850
        %v896 = vunpack.c.h.b16 %v850
        %v897 = vunpack.c.l.b16 %v851
        %v898 = vunpack.c.h.b16 %v851
        %v899 = vunpack.c.l.b16 %v852
        %v900 = vunpack.c.h.b16 %v852
        %v901 = vpack.c.b16 %v869, %v869
        %v902 = vpack.c.b16 %v870, %v870
        %v903 = vpack.c.b16 %v871, %v871
        %v904 = vpack.c.b16 %v872, %v872
        %v905 = vpack.c.b16 %v873, %v873
        %v906 = vpack.c.b16 %v874, %v874
        %v907 = vpack.c.b16 %v875, %v875
        %v908 = vpack.c.b16 %v876, %v876
        %v909 = vpack.c.b16 %v877, %v877
        %v910 = vpack.c.b16 %v878, %v878
        %v911 = vpack.c.b16 %v879, %v879
        %v912 = vpack.c.b16 %v880, %v880
        %v913 = vpack.c.b16 %v881, %v881
        %v914 = vpack.c.b16 %v882, %v882
        %v915 = vpack.c.b16 %v883, %v883
        %v916 = vpack.c.b16 %v884, %v884
        %v917 = vpack.c.b16 %v885, %v885
        %v918 = vpack.c.b16 %v886, %v886
        %v919 = vpack.c.b16 %v887, %v887
        %v920 = vpack.c.b16 %v888, %v888
        %v921 = vpack.c.b16 %v889, %v889
        %v922 = vpack.c.b16 %v890, %v890
        %v923 = vpack.c.b16 %v891, %v891
        %v924 = vpack.c.b16 %v892, %v892
        %v925 = vpack.c.b16 %v893, %v893
        %v926 = vpack.c.b16 %v894, %v894
        %v927 = vpack.c.b16 %v895, %v895
        %v928 = vpack.c.b16 %v896, %v896
        %v929 = vpack.c.b16 %v897, %v897
        %v930 = vpack.c.b16 %v898, %v898
        %v931 = vpack.c.b16 %v899, %v899
        %v932 = vpack.c.b16 %v900, %v900
        %vm965 = vcmask 257024
        %966 = vst.msk [vmem:[%s257] sm:$0xf] %vm965, %v901
        %967 = vst.msk [vmem:[%s257 + $0x4] sm:$0xf] %vm965, %v902
        %968 = vst.msk [vmem:[%s257 + $0x8] sm:$0xf] %vm965, %v903
        %969 = vst.msk [vmem:[%s257 + $0xc] sm:$0xf] %vm965, %v904
        %970 = vst.msk [vmem:[%s257 + $0x10] sm:$0xf] %vm965, %v905
        %971 = vst.msk [vmem:[%s257 + $0x14] sm:$0xf] %vm965, %v906
        %972 = vst.msk [vmem:[%s257 + $0x18] sm:$0xf] %vm965, %v907
        %973 = vst.msk [vmem:[%s257 + $0x1c] sm:$0xf] %vm965, %v908
        %974 = vst.msk [vmem:[%s257 + $0x20] sm:$0xf] %vm965, %v909
        %975 = vst.msk [vmem:[%s257 + $0x24] sm:$0xf] %vm965, %v910
        %976 = vst.msk [vmem:[%s257 + $0x28] sm:$0xf] %vm965, %v911
        %977 = vst.msk [vmem:[%s257 + $0x2c] sm:$0xf] %vm965, %v912
        %978 = vst.msk [vmem:[%s257 + $0x30] sm:$0xf] %vm965, %v913
        %979 = vst.msk [vmem:[%s257 + $0x34] sm:$0xf] %vm965, %v914
        %980 = vst.msk [vmem:[%s257 + $0x38] sm:$0xf] %vm965, %v915
        %981 = vst.msk [vmem:[%s257 + $0x3c] sm:$0xf] %vm965, %v916
        %982 = vst.msk [vmem:[%s257 + $0x40] sm:$0xf] %vm965, %v917
        %983 = vst.msk [vmem:[%s257 + $0x44] sm:$0xf] %vm965, %v918
        %984 = vst.msk [vmem:[%s257 + $0x48] sm:$0xf] %vm965, %v919
        %985 = vst.msk [vmem:[%s257 + $0x4c] sm:$0xf] %vm965, %v920
        %986 = vst.msk [vmem:[%s257 + $0x50] sm:$0xf] %vm965, %v921
        %987 = vst.msk [vmem:[%s257 + $0x54] sm:$0xf] %vm965, %v922
        %988 = vst.msk [vmem:[%s257 + $0x58] sm:$0xf] %vm965, %v923
        %989 = vst.msk [vmem:[%s257 + $0x5c] sm:$0xf] %vm965, %v924
        %990 = vst.msk [vmem:[%s257 + $0x60] sm:$0xf] %vm965, %v925
        %991 = vst.msk [vmem:[%s257 + $0x64] sm:$0xf] %vm965, %v926
        %992 = vst.msk [vmem:[%s257 + $0x68] sm:$0xf] %vm965, %v927
        %993 = vst.msk [vmem:[%s257 + $0x6c] sm:$0xf] %vm965, %v928
        %994 = vst.msk [vmem:[%s257 + $0x70] sm:$0xf] %vm965, %v929
        %995 = vst.msk [vmem:[%s257 + $0x74] sm:$0xf] %vm965, %v930
        %996 = vst.msk [vmem:[%s257 + $0x78] sm:$0xf] %vm965, %v931
        %997 = vst.msk [vmem:[%s257 + $0x7c] sm:$0xf] %vm965, %v932
      $region40: #{tpu_custom_call.1} parent=31 // pred_fallthru
        _
      %s998 = smul.u32 32, %s19
      %p999 = scmp.lt.s32.totalorder %s998, 63
      %s1000 = scalar_select %p999, %s998, 63
      %p1001 = scmp.lt.s32.totalorder %s20, 0
      %s1002 = scalar_select %p1001, %s20, 0
      %s1003 = sadd.s32 %s1002, %s1000
      %s1004 = smul.addr %s1003, 4
      %s1005 = scalar_lea.vmem %s3, %s1004
      // Predicated region
      $region41: #{tpu_custom_call.1} parent=31 // pred_check
        %p1006 = pneg %p135
      $region42: #{tpu_custom_call.1} parent=31 // pred_check_branch
        %1008 = sbr.rel (%p1006) target = $region44
      $region43: #{tpu_custom_call.1} parent=31 // pred_region
        %s1009 = smul.u32 32, %s19
      $region44: #{tpu_custom_call.1} parent=31 // pred_fallthru
        _
    $region32: #{tpu_custom_call.1} parent=5 // pred_fallthru
      _
    %p1010 = scmp.le.s32.totalorder 2, %s9
    // Predicated region
    $region45: #{tpu_custom_call.1} parent=5 // pred_check
      %p1011 = pneg %p1010
    $region46: #{tpu_custom_call.1} parent=5 // pred_check_branch
      %1013 = sbr.rel (%p1011) target = $region48
    $region47: #{tpu_custom_call.1} parent=5 // pred_region
      %s1014 = ssub.s32 %s9, 2
      // Predicated region
      $region49: #{tpu_custom_call.1} parent=47 // pred_check
        %p1015 = pneg %p141
      $region50: #{tpu_custom_call.1} parent=47 // pred_check_branch
        %1017 = sbr.rel (%p1015) target = $region52
      $region51: #{tpu_custom_call.1} parent=47 // pred_region
        %s1018 = smul.u32 32, %s22
        %p1019 = scmp.lt.s32.totalorder %s1018, 63
        %s1020 = scalar_select %p1019, %s1018, 63
        %p1021 = scmp.lt.s32.totalorder %s23, 0
        %s1022 = scalar_select %p1021, %s23, 0
        %s1023 = sadd.s32 %s1022, %s1020
        %s1024 = smul.addr %s1023, 4
        %s1025 = scalar_lea.vmem %s3, %s1024
      $region52: #{tpu_custom_call.1} parent=47 // pred_fallthru
        _
    $region48: #{tpu_custom_call.1} parent=5 // pred_fallthru
      _
  $region6: #{tpu_custom_call.1} parent=0 // loop_footer
    %s13 = sadd.s32 1, %s9
  $region7: #{tpu_custom_call.1} parent=0 // loop_footer_branch
    %8 = sbr.rel target = $region3
  $region8: #{tpu_custom_call.1} parent=0 // loop_exit
    _

</llo_original>
